<compile_context>
chip_gen: v7x
topology: tpu7x:2x2x1
jax: 0.10.0
libtpu: 0.0.40
codegen_flags: <defaults>
</compile_context>

<pallas_src>
import functools

import jax
import jax.numpy as jnp
from jax.experimental import pallas as pl
from jax.experimental.pallas import tpu as pltpu

DEFAULT_COEF = 0.97

_MAX_TB = 256                          # sublane rows per block (multiple of 8)
_TARGET_BLOCK_BYTES = 4 * 1024 * 1024  # ~4 MiB per in/out block


def _preemphasis_kernel(coef, halo_w, x_ref, halo_ref, o_ref):
    # x_ref / o_ref: (TB, TT) tile, time on the lane axis.
    # halo_ref: (TB, halo_w) window of the SAME array ending at this tile's
    #           first column (or the first halo_w columns when t == 0).
    x = x_ref[...]

    # shifted[:, j] = x[:, j-1] within this tile (lane 0 wraps; fixed below).
    # XLU roll -> free slot, no VALU/MXU cost.
    shifted = pltpu.roll(x, shift=1, axis=1)
    o_ref[...] = x - coef * shifted

    # Lane-0 fixup: previous sample is
    #   t == 0 : reflect pad -> x[:, 1]          (halo = cols [0, halo_w))
    #   t >= 1 : x[:, t*TT - 1]                  (halo = cols [t*TT-halo_w, t*TT))
    t = pl.program_id(1)
    prev0 = jnp.where(t == 0, halo_ref[:, 1:2], halo_ref[:, halo_w - 1:halo_w])
    o_ref[:, 0:1] = x[:, 0:1] - coef * prev0


def _choose_tiles(B, T, itemsize, block_bytes):
    # Batch tile: full B (exempt from the (8,128) rule) or a 256-row chunk.
    TB = B if B <= _MAX_TB else _MAX_TB
    # Time tile from the VMEM byte budget, rounded down to a multiple of 128.
    tt = max((block_bytes // (TB * itemsize)) // 128 * 128, 128)
    TT = T if T <= tt else tt
    return TB, TT


def preemphasis(x, coef=DEFAULT_COEF, block_bytes=_TARGET_BLOCK_BYTES):
    """y[:,0] = x[:,0] - coef*x[:,1];  y[:,t] = x[:,t] - coef*x[:,t-1]."""
    assert x.ndim == 2, "The number of dimensions of input tensor must be 2!"
    B, T = x.shape
    assert T >= 2, "reflect padding requires T >= 2"

    TB, TT = _choose_tiles(B, T, x.dtype.itemsize, block_bytes)
    halo_w = min(128, T)           # halo block width (full dim when T < 128)
    nb = max(TT // halo_w, 1)      # halo-width blocks per time tile
    grid = (pl.cdiv(B, TB), pl.cdiv(T, TT))

    # NOTE: coef is baked in; each distinct coef recompiles (fine for a
    # fixed-hyperparameter module; would move to an SMEM scalar otherwise).
    kernel = functools.partial(_preemphasis_kernel, coef, halo_w)

    return pl.pallas_call(
        kernel,
        out_shape=jax.ShapeDtypeStruct((B, T), x.dtype),
        grid_spec=pltpu.PrefetchScalarGridSpec(
            num_scalar_prefetch=0,
            grid=grid,
            in_specs=[
                # Main streaming tile of x.
                pl.BlockSpec((TB, TT), lambda i, t: (i, t)),
                # Halo: 128-wide block of x ending at this tile's first column
                # (t=0 -> first block; its column 1 is the reflect-pad value).
                pl.BlockSpec((TB, halo_w),
                             lambda i, t: (i, jnp.maximum(t * nb - 1, 0))),
            ],
            out_specs=pl.BlockSpec((TB, TT), lambda i, t: (i, t)),
        ),
        compiler_params=pltpu.CompilerParams(
            # No cross-iteration carry -> both axes parallel (v7x megacore).
            dimension_semantics=("parallel", "parallel"),
            vmem_limit_bytes=32 * 1024 * 1024,
        ),
    )(x, x)


def preemphasis_ref(x, coef=DEFAULT_COEF):
    # Pure-JAX reference matching the PyTorch module.
    padded = jnp.concatenate([x[:, 1:2], x], axis=1)   # reflect-pad left by 1
    return padded[:, 1:] - coef * padded[:, :-1]


if __name__ == "__main__":
    key = jax.random.PRNGKey(0)
    k1, k2, k3 = jax.random.split(key, 3)

    # Case 1: multiple time tiles at small shapes (force a tiny block budget
    # so the halo path across tile boundaries is exercised: TT=512, 4 tiles).
    x1 = jax.random.normal(k1, (4, 2048), dtype=jnp.float32)
    y1 = preemphasis(x1, block_bytes=8192)
    jax.block_until_ready(y1)
    assert y1.shape == x1.shape
    assert jnp.allclose(y1, preemphasis_ref(x1), atol=1e-6, rtol=1e-6), "mismatch (tiled T)"

    # Case 2: single-tile case (full-array block, B not a multiple of 8).
    x2 = jax.random.normal(k2, (3, 512), dtype=jnp.float32)
    y2 = preemphasis(x2)
    jax.block_until_ready(y2)
    assert y2.shape == x2.shape
    assert jnp.allclose(y2, preemphasis_ref(x2), atol=1e-6, rtol=1e-6), "mismatch (single tile)"

    # Case 3: ragged T (not a multiple of 128) with a padded last time tile.
    x3 = jax.random.normal(k3, (2, 700), dtype=jnp.float32)
    y3 = preemphasis(x3, block_bytes=4096)   # TT=512 -> 2 tiles, last padded
    jax.block_until_ready(y3)
    assert y3.shape == x3.shape
    assert jnp.allclose(y3, preemphasis_ref(x3), atol=1e-6, rtol=1e-6), "mismatch (ragged T)"

    print("KERNEL_OK")
</pallas_src>

<mosaic_0001>
module attributes {stable_mosaic.version = 11 : i64} {
  func.func @_preemphasis_kernel(%arg0: i32, %arg1: i32, %arg2: memref<4x512xf32, #tpu.memory_space<vmem>>, %arg3: memref<4x128xf32, #tpu.memory_space<vmem>>, %arg4: memref<4x512xf32, #tpu.memory_space<vmem>>) attributes {dimension_semantics = [#tpu.dimension_semantics<parallel>, #tpu.dimension_semantics<parallel>], iteration_bounds = array<i64: 1, 4>, scalar_prefetch = 0 : i64, scratch_operands = 0 : i64, tpu.core_type = #tpu.core_type<tc>, window_params = [{transform_indices = @transform_0, window_bounds = array<i64: 4, 512>}, {transform_indices = @transform_1, window_bounds = array<i64: 4, 128>}, {transform_indices = @transform_2, window_bounds = array<i64: 4, 512>}]} {
    %c0 = arith.constant 0 : index
    %c0_0 = arith.constant 0 : index
    %0 = vector.load %arg2[%c0, %c0_0] : memref<4x512xf32, #tpu.memory_space<vmem>>, vector<4x512xf32>
    %c1_i32 = arith.constant 1 : i32
    %1 = tpu.dynamic_rotate %0 by %c1_i32 dim 1 : vector<4x512xf32>, i32 -> vector<4x512xf32>
    %cst = arith.constant 9.700000e-01 : f32
    %2 = vector.broadcast %cst : f32 to vector<4x512xf32>
    %3 = arith.mulf %2, %1 : vector<4x512xf32>
    %4 = arith.subf %0, %3 : vector<4x512xf32>
    %c0_1 = arith.constant 0 : index
    %c0_2 = arith.constant 0 : index
    %5 = vector.load %arg4[%c0_1, %c0_2] : memref<4x512xf32, #tpu.memory_space<vmem>>, vector<4x512xf32>
    tpu.vector_store %arg4[%c0_1, %c0_2], %4 {strides = array<i32>} : memref<4x512xf32, #tpu.memory_space<vmem>>, vector<4x512xf32>,
    %c0_i32 = arith.constant 0 : i32
    %6 = arith.cmpi eq, %arg1, %c0_i32 : i32
    %c0_3 = arith.constant 0 : index
    %c1 = arith.constant 1 : index
    %7 = vector.load %arg3[%c0_3, %c1] : memref<4x128xf32, #tpu.memory_space<vmem>>, vector<4x1xf32>
    %c0_4 = arith.constant 0 : index
    %c127 = arith.constant 127 : index
    %8 = vector.load %arg3[%c0_4, %c127] : memref<4x128xf32, #tpu.memory_space<vmem>>, vector<4x1xf32>
    %9 = arith.select %6, %7, %8 : vector<4x1xf32>
    %10 = vector.extract_strided_slice %0 {offsets = [0, 0], sizes = [4, 1], strides = [1, 1]} : vector<4x512xf32> to vector<4x1xf32>
    %cst_5 = arith.constant 9.700000e-01 : f32
    %11 = vector.broadcast %cst_5 : f32 to vector<4x1xf32>
    %12 = arith.mulf %11, %9 : vector<4x1xf32>
    %13 = arith.subf %10, %12 : vector<4x1xf32>
    %c0_6 = arith.constant 0 : index
    %c0_7 = arith.constant 0 : index
    %14 = vector.load %arg4[%c0_6, %c0_7] : memref<4x512xf32, #tpu.memory_space<vmem>>, vector<4x1xf32>
    tpu.vector_store %arg4[%c0_6, %c0_7], %13 {strides = array<i32>} : memref<4x512xf32, #tpu.memory_space<vmem>>, vector<4x1xf32>,
    return
  }
  func.func @transform_0(%arg0: i32, %arg1: i32) -> (i32, i32) {
    %c0_i32 = arith.constant 0 : i32
    return %arg0, %arg1 : i32, i32
  }
  func.func @transform_1(%arg0: i32, %arg1: i32) -> (i32, i32) {
    %c4_i32 = arith.constant 4 : i32
    %0 = arith.muli %arg1, %c4_i32 : i32
    %c1_i32 = arith.constant 1 : i32
    %1 = arith.subi %0, %c1_i32 : i32
    %c0_i32 = arith.constant 0 : i32
    %2 = arith.maxsi %1, %c0_i32 : i32
    %c0_i32_0 = arith.constant 0 : i32
    return %arg0, %2 : i32, i32
  }
  func.func @transform_2(%arg0: i32, %arg1: i32) -> (i32, i32) {
    %c0_i32 = arith.constant 0 : i32
    return %arg0, %arg1 : i32, i32
  }
}

</mosaic_0001>

<llo_original>
// kernel: tpu_custom_call.1
$region0: #{tpu_custom_call.1}
  #allocation0 [shape = 'u32[]', space=smem, size = 0x4, offset = 0x4, fixed_abs, tag = 'smem constant byte address 0x4 - core index']
  #allocation1 [shape = 'u32[144,128]{1,0:T(1,128)}', space=vmem, size = 0x12000, scoped, tag = 'internal scratch']
  %s0 = inlined_call_operand.hbm [shape: f32[4,2048], index: 0, kind: input, shape index: {}]
  %s1 = inlined_call_operand.hbm [shape: f32[4,2048], index: 1, kind: input, shape index: {}]
  %s2 = inlined_call_operand.hbm [shape: f32[4,2048], index: 2, kind: output, shape index: {}]
  %s3 = sld [smem:[#allocation0]]
  $region49: #{tpu_custom_call.1} parent=0
    _
  %s5 = ssub.s32 1, %s3
  %s6 = scalar_select 0, %s5, %s3
  $region1: #{tpu_custom_call.1} parent=0
    #allocation2 [shape = 'u8[16384]{0}', space=vmem, size = 0x4000, scoped, tag = 'input window, operand 0']
    #allocation3 [shape = 's32[2]{0}', space=sflag, size = 0x8, scoped, tag = 'scoped memory for tpu_custom_call.1']
    #allocation4 [shape = 's32[2]{0}', space=sflag, size = 0x8, scoped, tag = 'scoped memory for tpu_custom_call.1']
    #allocation5 [shape = 'u8[4096]{0}', space=vmem, size = 0x1000, scoped, tag = 'input window, operand 1']
    #allocation6 [shape = 's32[2]{0}', space=sflag, size = 0x8, scoped, tag = 'scoped memory for tpu_custom_call.1']
    #allocation7 [shape = 'u8[16384]{0}', space=vmem, size = 0x4000, scoped, tag = 'output window, operand 0']
    %7 = vsyncpa [#allocation3], 0
    %s8 = scalar_lea.sflag [#allocation3], 1
    %9 = vsyncpa %s8, 0
    %10 = vsyncpa [#allocation6], 0
    %s11 = scalar_lea.sflag [#allocation6], 1
    %12 = vsyncpa %s11, 0
    %13 = vsyncpa [#allocation4], 0
    %s14 = scalar_lea.sflag [#allocation4], 1
    %15 = vsyncpa %s14, 0
    loop: start=0, step=1, limit=6
    $region2: #{tpu_custom_call.1} parent=1 // loop_pre_header
      _
    $region3: #{tpu_custom_call.1} parent=1 // loop_header
      %s17 = sphi 0, %s21
      %p18 = scmp.ge.s32.totalorder %s17, 6
      %s24 = sphi 0, %s36
      %s25 = sphi 0, %s32
      %s26 = sphi 0, %s24
      %s27 = sphi 0, %s25
      %s28 = sphi 0, %s26
      %s29 = sphi 0, %s27
      %s41 = sphi 0, %s43
      %s44 = sphi 0, %s41
      %s45 = sphi 0, %s44
      %s61 = sphi 0, %s45
      %s77 = sphi 0, %s79
      %s80 = sphi 0, %s77
      %s81 = sphi 0, %s80
      %s97 = sphi 0, %s81
      %s105 = sphi 0, %s107
      %s108 = sphi 0, %s105
      %s109 = sphi 0, %s108
      %s125 = sphi 0, %s109
    $region4: #{tpu_custom_call.1} parent=1 // loop_header_branch
      %20 = sbr.rel (%p18) target = $region8
    $region5: #{tpu_custom_call.1} parent=1 // loop_body
      %s22 = ssub.s32 %s17, 1
      %s23 = ssub.s32 %s17, 2
      %s30 = sadd.s32 1, %s25
      %p31 = scmp.ge.s32.totalorder %s30, 4
      %s32 = scalar_select %p31, 0, %s30
      %s33 = sadd.s32 1, %s24
      %s34 = scalar_select %p31, %s33, %s24
      %p35 = scmp.ge.s32.totalorder %s34, 1
      %s36 = scalar_select %p35, 0, %s34
      %s37 = ssub.s32 %s24, %s36
      %s38 = ssub.s32 %s25, %s32
      %s39 = sor.u32 %s37, %s38
      %p40 = scmp.eq.s32.totalorder %s39, 0
      %s42 = sadd.s32 %s41, 1
      %s43 = scalar_select %p40, %s41, %s42
      %p46 = pneg %p40
      %p47 = scmp.eq.s32.totalorder %s17, 3
      %p48 = por %p46, %p47
      %p49 = scmp.ne.s32.totalorder %s41, %s44
      %p50 = scmp.eq.s32.totalorder %s17, 0
      %p51 = por %p49, %p50
      %p52 = scmp.ne.s32.totalorder %s41, %s44
      %p53 = scmp.eq.s32.totalorder %s22, 3
      %p54 = por %p52, %p53
      %p55 = scmp.ne.s32.totalorder %s44, %s45
      %p56 = scmp.eq.s32.totalorder %s22, 0
      %p57 = por %p55, %p56
      %p58 = scmp.ne.s32.totalorder %s44, %s45
      %p59 = scmp.eq.s32.totalorder %s23, 3
      %p60 = por %p58, %p59
      %p62 = scmp.ne.s32.totalorder %s45, %s61
      %p63 = scmp.eq.s32.totalorder %s23, 0
      %p64 = por %p62, %p63
      %s65 = smul.u32 %s25, 4
      %s66 = ssub.s32 %s65, 1
      %p67 = scmp.gt.s32.totalorder %s66, 0
      %s68 = scalar_select %p67, %s66, 0
      %s69 = smul.u32 %s32, 4
      %s70 = ssub.s32 %s69, 1
      %p71 = scmp.gt.s32.totalorder %s70, 0
      %s72 = scalar_select %p71, %s70, 0
      %s73 = ssub.s32 %s24, %s36
      %s74 = ssub.s32 %s68, %s72
      %s75 = sor.u32 %s73, %s74
      %p76 = scmp.eq.s32.totalorder %s75, 0
      %s78 = sadd.s32 %s77, 1
      %s79 = scalar_select %p76, %s77, %s78
      %p82 = pneg %p76
      %p83 = scmp.eq.s32.totalorder %s17, 3
      %p84 = por %p82, %p83
      %p85 = scmp.ne.s32.totalorder %s77, %s80
      %p86 = scmp.eq.s32.totalorder %s17, 0
      %p87 = por %p85, %p86
      %p88 = scmp.ne.s32.totalorder %s77, %s80
      %p89 = scmp.eq.s32.totalorder %s22, 3
      %p90 = por %p88, %p89
      %p91 = scmp.ne.s32.totalorder %s80, %s81
      %p92 = scmp.eq.s32.totalorder %s22, 0
      %p93 = por %p91, %p92
      %p94 = scmp.ne.s32.totalorder %s80, %s81
      %p95 = scmp.eq.s32.totalorder %s23, 3
      %p96 = por %p94, %p95
      %p98 = scmp.ne.s32.totalorder %s81, %s97
      %p99 = scmp.eq.s32.totalorder %s23, 0
      %p100 = por %p98, %p99
      %s101 = ssub.s32 %s24, %s36
      %s102 = ssub.s32 %s25, %s32
      %s103 = sor.u32 %s101, %s102
      %p104 = scmp.eq.s32.totalorder %s103, 0
      %s106 = sadd.s32 %s105, 1
      %s107 = scalar_select %p104, %s105, %s106
      %p110 = pneg %p104
      %p111 = scmp.eq.s32.totalorder %s17, 3
      %p112 = por %p110, %p111
      %p113 = scmp.ne.s32.totalorder %s105, %s108
      %p114 = scmp.eq.s32.totalorder %s17, 0
      %p115 = por %p113, %p114
      %p116 = scmp.ne.s32.totalorder %s105, %s108
      %p117 = scmp.eq.s32.totalorder %s22, 3
      %p118 = por %p116, %p117
      %p119 = scmp.ne.s32.totalorder %s108, %s109
      %p120 = scmp.eq.s32.totalorder %s22, 0
      %p121 = por %p119, %p120
      %p122 = scmp.ne.s32.totalorder %s108, %s109
      %p123 = scmp.eq.s32.totalorder %s23, 3
      %p124 = por %p122, %p123
      %p126 = scmp.ne.s32.totalorder %s109, %s125
      %p127 = scmp.eq.s32.totalorder %s23, 0
      %p128 = por %p126, %p127
      %p129 = scmp.le.s32.totalorder 1, %s17
      %p130 = scmp.lt.s32.totalorder %s17, 5
      %p131 = pnand %p129, %p130
      %p132 = pneg %p131
      // Predicated region
      $region9: #{tpu_custom_call.1} parent=5 // pred_check
        _
      $region10: #{tpu_custom_call.1} parent=5 // pred_check_branch
        %134 = sbr.rel (%p131) target = $region12
      $region11: #{tpu_custom_call.1} parent=5 // pred_region
        %s135 = ssub.s32 %s17, 1
      $region12: #{tpu_custom_call.1} parent=5 // pred_fallthru
        _
      %p136 = scmp.lt.s32.totalorder %s17, 4
      // Predicated region
      $region13: #{tpu_custom_call.1} parent=5 // pred_check
        %p137 = pneg %p136
      $region14: #{tpu_custom_call.1} parent=5 // pred_check_branch
        %139 = sbr.rel (%p137) target = $region16
      $region15: #{tpu_custom_call.1} parent=5 // pred_region
        // Predicated region
        $region17: #{tpu_custom_call.1} parent=15 // pred_check
          %p140 = pneg %p51
        $region18: #{tpu_custom_call.1} parent=15 // pred_check_branch
          %142 = sbr.rel (%p140) target = $region20
        $region19: #{tpu_custom_call.1} parent=15 // pred_region
          %s143 = sand.u32 %s41, 1
          %s144 = scalar_lea.sflag [#allocation3], %s143
          %s145 = sand.u32 %s41, 1
          %s146 = smul.addr %s145, 16
          %s147 = scalar_lea.vmem [#allocation2], %s146
          %s148 = smul.u32 4, %s25
          %s150 = ssub.s32 256, 256
          %151 = vsyncadd %s144, %s150
          %s152 = smul.addr %s24, 16
          %s153 = sadd.s32 %s148, %s152
          %s154 = smul.addr %s153, 64
          %s155 = scalar_lea.hbm %s0, %s154
          %s157 = sshll.u32 %s147, 4
          %s158 = int_to_ptr.vmem [resolvable:$true] %s157
          %160 = dma.hbm_to_vmem [thread:$0]  %s155, 256, %s158, %s144
        $region20: #{tpu_custom_call.1} parent=15 // pred_fallthru
          _
        // Predicated region
        $region21: #{tpu_custom_call.1} parent=15 // pred_check
          %p161 = pneg %p87
        $region22: #{tpu_custom_call.1} parent=15 // pred_check_branch
          %163 = sbr.rel (%p161) target = $region24
        $region23: #{tpu_custom_call.1} parent=15 // pred_region
          %s164 = sand.u32 %s77, 1
          %s165 = scalar_lea.sflag [#allocation6], %s164
          %s166 = sand.u32 %s77, 1
          %s167 = smul.addr %s166, 4
          %s168 = scalar_lea.vmem [#allocation5], %s167
          %s169 = smul.u32 %s25, 4
          %s170 = ssub.s32 %s169, 1
          %p171 = scmp.gt.s32.totalorder %s170, 0
          %s172 = scalar_select %p171, %s170, 0
          %s174 = ssub.s32 64, 64
          %175 = vsyncadd %s165, %s174
          %s176 = smul.addr %s24, 16
          %s177 = sadd.s32 %s172, %s176
          %s178 = smul.addr %s177, 64
          %s179 = scalar_lea.hbm %s1, %s178
          %s181 = sshll.u32 %s168, 4
          %s182 = int_to_ptr.vmem [resolvable:$true] %s181
          %184 = dma.hbm_to_vmem [thread:$0]  %s179, 64, %s182, %s165
        $region24: #{tpu_custom_call.1} parent=15 // pred_fallthru
          _
      $region16: #{tpu_custom_call.1} parent=5 // pred_fallthru
        _
      %p185 = scmp.le.s32.totalorder 1, %s17
      %p186 = scmp.lt.s32.totalorder %s17, 5
      %p187 = pnand %p185, %p186
      %p188 = pneg %p187
      // Predicated region
      $region25: #{tpu_custom_call.1} parent=5 // pred_check
        _
      $region26: #{tpu_custom_call.1} parent=5 // pred_check_branch
        %190 = sbr.rel (%p187) target = $region28
      $region27: #{tpu_custom_call.1} parent=5 // pred_region
        %s191 = ssub.s32 %s17, 1
        %s192 = sand.u32 %s44, 1
        %s193 = scalar_lea.sflag [#allocation3], %s192
        %s194 = sand.u32 %s44, 1
        %s195 = smul.addr %s194, 16
        %s196 = scalar_lea.vmem [#allocation2], %s195
        // Predicated region
        $region29: #{tpu_custom_call.1} parent=27 // pred_check
          %p197 = pneg %p57
        $region30: #{tpu_custom_call.1} parent=27 // pred_check_branch
          %199 = sbr.rel (%p197) target = $region32
        $region31: #{tpu_custom_call.1} parent=27 // pred_region
          %200 = dma.done %s193, 256
        $region32: #{tpu_custom_call.1} parent=27 // pred_fallthru
          _
        %s201 = sand.u32 %s80, 1
        %s202 = scalar_lea.sflag [#allocation6], %s201
        %s203 = sand.u32 %s80, 1
        %s204 = smul.addr %s203, 4
        %s205 = scalar_lea.vmem [#allocation5], %s204
        // Predicated region
        $region33: #{tpu_custom_call.1} parent=27 // pred_check
          %p206 = pneg %p93
        $region34: #{tpu_custom_call.1} parent=27 // pred_check_branch
          %208 = sbr.rel (%p206) target = $region36
        $region35: #{tpu_custom_call.1} parent=27 // pred_region
          %209 = dma.done %s202, 64
        $region36: #{tpu_custom_call.1} parent=27 // pred_fallthru
          _
        %s210 = sand.u32 %s44, 1
        %s211 = scalar_lea.sflag [#allocation3], %s210
        %s212 = sand.u32 %s44, 1
        %s213 = smul.addr %s212, 16
        %s214 = scalar_lea.vmem [#allocation2], %s213
        %p215 = pneg %p57
        %p216 = pneg %p54
        %s217 = sand.u32 %s80, 1
        %s218 = scalar_lea.sflag [#allocation6], %s217
        %s219 = sand.u32 %s80, 1
        %s220 = smul.addr %s219, 4
        %s221 = scalar_lea.vmem [#allocation5], %s220
        %p222 = pneg %p93
        %p223 = pneg %p90
        %p224 = pneg %p121
        %p225 = pneg %p118
        %s226 = sand.u32 %s108, 1
        %s227 = scalar_lea.sflag [#allocation4], %s226
        %s228 = sand.u32 %s108, 1
        %s229 = smul.addr %s228, 16
        %s230 = scalar_lea.vmem [#allocation7], %s229
        %s231 = smul.u32 4, %s27
        %s232 = smul.u32 %s27, 4
        %s233 = ssub.s32 %s232, 1
        %p234 = scmp.gt.s32.totalorder %s233, 0
        %s235 = scalar_select %p234, %s233, 0
        %s236 = smul.u32 4, %s27
        %v237 = vld [vmem:[%s196] sm:$0xff]
        %v238 = vld [vmem:[%s196 + $0x8] sm:$0xff]
        %v241 = vcombine.high %v237, %v237
        %v242 = vcombine.high %v238, %v238
        %245 = vrot.lane.b32.xlu0 %v237, 1
        %v246 = vpop.permute.xlu0 %245
        %247 = vrot.lane.b32.xlu0 %v241, 1
        %v248 = vpop.permute.xlu0 %247
        %249 = vrot.lane.b32.xlu0 %v238, 1
        %v250 = vpop.permute.xlu0 %249
        %251 = vrot.lane.b32.xlu0 %v242, 1
        %v252 = vpop.permute.xlu0 %251
        %v253 = vlaneseq
        %v254 = vand.u32 %v253, 127
        %vm255 = vcmp.lt.s32.totalorder %v254, 1
        %v256 = vsel %vm255, %v250, %v252
        %v257 = vsel %vm255, %v248, %v250
        %v258 = vsel %vm255, %v246, %v248
        %v259 = vsel %vm255, %v252, %v246
        %v260 = vmul.f32 %v259, 0.97
        %v261 = vmul.f32 %v258, 0.97
        %v262 = vmul.f32 %v257, 0.97
        %v263 = vmul.f32 %v256, 0.97
        %v268 = vcombine.low %v260, %v261
        %v269 = vcombine.low %v262, %v263
        %v272 = vsub.f32 %v237, %v268
        %v273 = vsub.f32 %v238, %v269
        %274 = vst [vmem:[%s230] sm:$0xff] %v272
        %275 = vst [vmem:[%s230 + $0x8] sm:$0xff] %v273
        %p276 = scmp.eq.s32.totalorder %s27, 0
        %v277 = vld [vmem:[%s205] sm:$0xf]
        %s278 = scalar_select %p276, 1, 0
        %v279 = vstv %s278
        %vm280 = vcmp.eq.s32.totalorder %v279, 1
        %282 = vrot.lane.b32.xlu0 %v277, 2
        %v283 = vpop.permute.xlu0 %282
        %v285 = vsel %vm280, %v277, %v283
        %v286 = vmul.f32 %v285, 0.97
        %288 = vrot.lane.b32.xlu0 %v286, 127
        %v289 = vpop.permute.xlu0 %288
        %v291 = vsub.f32 %v237, %v289
        %vm292 = vcmask 3072
        %293 = vst.msk [vmem:[%s230] sm:$0xf] %vm292, %v291
        %s294 = sand.u32 %s108, 1
        %s295 = scalar_lea.sflag [#allocation4], %s294
        %s296 = sand.u32 %s108, 1
        %s297 = smul.addr %s296, 16
        %s298 = scalar_lea.vmem [#allocation7], %s297
        // Predicated region
        $region37: #{tpu_custom_call.1} parent=27 // pred_check
          %p299 = pneg %p118
        $region38: #{tpu_custom_call.1} parent=27 // pred_check_branch
          %301 = sbr.rel (%p299) target = $region40
        $region39: #{tpu_custom_call.1} parent=27 // pred_region
          %s302 = smul.u32 4, %s27
          %s304 = ssub.s32 256, 256
          %305 = vsyncadd %s295, %s304
          %s306 = smul.addr %s26, 16
          %s307 = sadd.s32 %s302, %s306
          %s308 = smul.addr %s307, 64
          %s309 = scalar_lea.hbm %s2, %s308
          %s311 = sshll.u32 %s298, 4
          %s312 = int_to_ptr.vmem [resolvable:$true] %s311
          %314 = dma.vmem_to_hbm [thread:$0]  %s312, 256, %s309, %s295
        $region40: #{tpu_custom_call.1} parent=27 // pred_fallthru
          _
      $region28: #{tpu_custom_call.1} parent=5 // pred_fallthru
        _
      %p315 = scmp.le.s32.totalorder 2, %s17
      // Predicated region
      $region41: #{tpu_custom_call.1} parent=5 // pred_check
        %p316 = pneg %p315
      $region42: #{tpu_custom_call.1} parent=5 // pred_check_branch
        %318 = sbr.rel (%p316) target = $region44
      $region43: #{tpu_custom_call.1} parent=5 // pred_region
        %s319 = ssub.s32 %s17, 2
        // Predicated region
        $region45: #{tpu_custom_call.1} parent=43 // pred_check
          %p320 = pneg %p124
        $region46: #{tpu_custom_call.1} parent=43 // pred_check_branch
          %322 = sbr.rel (%p320) target = $region48
        $region47: #{tpu_custom_call.1} parent=43 // pred_region
          %s323 = sand.u32 %s109, 1
          %s324 = scalar_lea.sflag [#allocation4], %s323
          %s325 = sand.u32 %s109, 1
          %s326 = smul.addr %s325, 16
          %s327 = scalar_lea.vmem [#allocation7], %s326
          %328 = dma.done %s324, 256
        $region48: #{tpu_custom_call.1} parent=43 // pred_fallthru
          _
      $region44: #{tpu_custom_call.1} parent=5 // pred_fallthru
        _
    $region6: #{tpu_custom_call.1} parent=1 // loop_footer
      %s21 = sadd.s32 1, %s17
    $region7: #{tpu_custom_call.1} parent=1 // loop_footer_branch
      %16 = sbr.rel target = $region3
    $region8: #{tpu_custom_call.1} parent=1 // loop_exit
      _
    %329 = vsyncpa [#allocation3], 1
    %s330 = scalar_lea.sflag [#allocation3], 1
    %331 = vsyncpa %s330, 1
    %332 = vsyncpa [#allocation6], 1
    %s333 = scalar_lea.sflag [#allocation6], 1
    %334 = vsyncpa %s333, 1
    %335 = vsyncpa [#allocation4], 1
    %s336 = scalar_lea.sflag [#allocation4], 1
    %337 = vsyncpa %s336, 1

</llo_original>
